<compile_context>
chip_gen: v7x
topology: tpu7x:2x2x1
jax: 0.10.0
libtpu: 0.0.40
codegen_flags: <defaults>
</compile_context>

<pallas_src>
import functools

import jax
import jax.numpy as jnp
from jax.experimental import pallas as pl
from jax.experimental.pallas import tpu as pltpu

N_STATES = 5
N_STATES_PAD = 8            # K of fc1 zero-padded to a sublane-friendly size
N_MID = 64
N_ACTIONS = 3
N_HEAD = N_ACTIONS + 1      # fused adv|val head width
_PSUM_ROWS = 8              # (8, 128)-aligned partial-sum slab per grid step
_PSUM_LANES = 128


def _round_up(n, m):
    return ((n + m - 1) // m) * m


def _dqn_kernel(x_ref, w1_ref, b1_ref, w2_ref, b2_ref, wh_ref, bh_ref,
                q_ref, psum_ref, *, batch):
    """One feature-major batch tile.

    x_ref: (8, tb)   compute dtype (batch along lanes)
    q_ref: (3, tb)   f32, q_raw = val + adv (global mean subtracted in wrapper)
    psum_ref: (8, 128) f32, broadcast of this tile's masked sum of adv.
    """
    tb = x_ref.shape[-1]
    x = x_ref[...]                                                      # (8, tb)

    # fc1 + relu (MXU matmul, f32 accumulate; bias/ReLU in f32)
    h1 = jnp.dot(w1_ref[...], x, preferred_element_type=jnp.float32) + b1_ref[...]
    h1 = jnp.maximum(h1, 0.0).astype(w2_ref.dtype)                      # (64, tb)

    # fc2 + relu
    h2 = jnp.dot(w2_ref[...], h1, preferred_element_type=jnp.float32) + b2_ref[...]
    h2 = jnp.maximum(h2, 0.0).astype(wh_ref.dtype)                      # (64, tb)

    # fused dueling head: rows [0:3] = adv, row [3] = val
    head = jnp.dot(wh_ref[...], h2, preferred_element_type=jnp.float32) + bh_ref[...]
    adv = head[:N_ACTIONS, :]                                           # (3, tb)
    val = head[N_ACTIONS:N_HEAD, :]                                     # (1, tb)

    # Lane-dense store of q_raw (last dim = tb, a multiple of 128).
    q_ref[...] = (adv + val).astype(q_ref.dtype)

    # Masked per-tile partial sum of adv: columns past the true batch (zero-padded
    # inputs still produce nonzero adv from the biases) must not pollute the mean.
    col = jax.lax.broadcasted_iota(jnp.int32, (N_ACTIONS, tb), 1)
    valid = (pl.program_id(0) * tb + col) < batch
    s = jnp.sum(jnp.where(valid, adv, 0.0))
    psum_ref[...] = jnp.zeros((_PSUM_ROWS, _PSUM_LANES), jnp.float32) + s


def _pack_params(params, compute_dtype):
    """Feature-major packing: pad fc1's K to 8, transpose weights to (out, in),
    fuse adv|val heads, biases as (out, 1) columns, matmul weights in compute dtype."""
    w1 = jnp.pad(params["w1"], ((0, N_STATES_PAD - N_STATES), (0, 0)))
    w1 = w1.T.astype(compute_dtype)                                     # (64, 8)
    b1 = params["b1"].reshape(N_MID, 1).astype(jnp.float32)             # (64, 1)
    w2 = params["w2"].T.astype(compute_dtype)                           # (64, 64)
    b2 = params["b2"].reshape(N_MID, 1).astype(jnp.float32)             # (64, 1)
    wh = jnp.concatenate([params["wadv"], params["wv"]], axis=1)
    wh = wh.T.astype(compute_dtype)                                     # (4, 64)
    bh = jnp.concatenate([params["badv"], params["bv"]], axis=1)
    bh = bh.reshape(N_HEAD, 1).astype(jnp.float32)                      # (4, 1)
    return w1, b1, w2, b2, wh, bh


def dqn_forward(x, params, *, tile_b=8192, compute_dtype=jnp.bfloat16):
    """x: (B, N_STATES) float32. Returns (B, N_ACTIONS) float32."""
    B = x.shape[0]

    # Batch tile (lane dim): multiple of 128, roughly balanced across tiles so
    # padding overshoot stays < 128 rows per tile, and forced to >= 2 grid
    # steps whenever the batch allows so v7x's two TensorCores both get work.
    # At the default ~8K tile the per-step working set (double-buffered x/q
    # blocks + f32 h1/h2 intermediates) is ~6-8 MiB: safely under the 16 MiB
    # v5e scoped-VMEM default (32 MiB on v6e/v7x), so no vmem_limit_bytes
    # override is needed. Raise tile_b + vmem_limit_bytes on v6e/v7x if B is
    # huge and profiling shows per-grid-step overhead exposed.
    n_guess = max(1, pl.cdiv(B, int(tile_b)))
    if n_guess == 1 and B > 128:
        n_guess = 2
    tb = max(128, _round_up(pl.cdiv(B, n_guess), 128))
    n_tiles = pl.cdiv(B, tb)
    b_pad = n_tiles * tb

    # Feature-major input: (N_STATES_PAD, B_pad), zero-padded (layout plumbing
    # done once in the wrapper, outside the hot loop).
    xp = jnp.pad(x.astype(jnp.float32),
                 ((0, b_pad - B), (0, N_STATES_PAD - N_STATES)))
    xp = xp.T.astype(compute_dtype)

    w1, b1, w2, b2, wh, bh = _pack_params(params, compute_dtype)

    itemsize = jnp.dtype(compute_dtype).itemsize
    flops = 2 * b_pad * (N_STATES_PAD * N_MID + N_MID * N_MID + N_MID * N_HEAD)
    bytes_accessed = (b_pad * N_STATES_PAD * itemsize                    # x
                      + sum(int(a.size) * a.dtype.itemsize
                            for a in (w1, b1, w2, b2, wh, bh))           # resident weights
                      + b_pad * N_ACTIONS * 4                            # q_raw
                      + n_tiles * _PSUM_ROWS * _PSUM_LANES * 4)          # partial sums
    cost = pl.CostEstimate(flops=int(flops), transcendentals=0,
                           bytes_accessed=int(bytes_accessed))

    resident = lambda shape: pl.BlockSpec(shape, lambda i: (0, 0))       # never re-DMA'd

    q_raw, psum = pl.pallas_call(
        functools.partial(_dqn_kernel, batch=B),
        grid=(n_tiles,),
        in_specs=[
            pl.BlockSpec((N_STATES_PAD, tb), lambda i: (0, i)),          # x tile (feature-major)
            resident((N_MID, N_STATES_PAD)),                             # w1^T
            resident((N_MID, 1)),                                        # b1
            resident((N_MID, N_MID)),                                    # w2^T
            resident((N_MID, 1)),                                        # b2
            resident((N_HEAD, N_MID)),                                   # fused head weight^T
            resident((N_HEAD, 1)),                                       # fused head bias
        ],
        out_specs=[
            pl.BlockSpec((N_ACTIONS, tb), lambda i: (0, i)),             # q_raw (lane-dense)
            pl.BlockSpec((_PSUM_ROWS, _PSUM_LANES), lambda i: (i, 0)),   # adv partial sums
        ],
        out_shape=(
            jax.ShapeDtypeStruct((N_ACTIONS, b_pad), jnp.float32),
            jax.ShapeDtypeStruct((n_tiles * _PSUM_ROWS, _PSUM_LANES), jnp.float32),
        ),
        compiler_params=pltpu.CompilerParams(dimension_semantics=("parallel",)),
        cost_estimate=cost,
    )(xp, w1, b1, w2, b2, wh, bh)

    # Exact global mean over the true batch (padded columns were masked in-kernel).
    adv_mean = jnp.sum(psum[::_PSUM_ROWS, 0]) / (B * N_ACTIONS)
    return q_raw[:, :B].T - adv_mean


def init_params(key):
    """Synthetic init mimicking DQNNet.__init__: weights ~ Normal(0.1, 0.4),
    biases ~ torch-default uniform. Weights stored as (in_features, out_features)."""
    ks = jax.random.split(key, 8)

    def w(k, shape):
        return (0.1 + 0.4 * jax.random.normal(k, shape)).astype(jnp.float32)

    def bias(k, fan_in, n_out):
        bound = 1.0 / jnp.sqrt(float(fan_in))
        return jax.random.uniform(k, (1, n_out), minval=-bound, maxval=bound,
                                  dtype=jnp.float32)

    return {
        "w1":   w(ks[0], (N_STATES, N_MID)),
        "b1":   bias(ks[1], N_STATES, N_MID),
        "w2":   w(ks[2], (N_MID, N_MID)),
        "b2":   bias(ks[3], N_MID, N_MID),
        "wadv": w(ks[4], (N_MID, N_ACTIONS)),
        "badv": bias(ks[5], N_MID, N_ACTIONS),
        "wv":   w(ks[6], (N_MID, 1)),
        "bv":   bias(ks[7], N_MID, 1),
    }


def _reference(x, p, compute_dtype=jnp.float32):
    """Pure-JAX reference. compute_dtype mirrors the kernel's matmul precision."""
    hp = jax.lax.Precision.HIGHEST
    dot = functools.partial(jnp.dot, preferred_element_type=jnp.float32, precision=hp)
    cd = compute_dtype
    h1 = jnp.maximum(dot(x.astype(cd), p["w1"].astype(cd)) + p["b1"], 0.0)
    h2 = jnp.maximum(dot(h1.astype(cd), p["w2"].astype(cd)) + p["b2"], 0.0)
    adv = dot(h2.astype(cd), p["wadv"].astype(cd)) + p["badv"]
    val = dot(h2.astype(cd), p["wv"].astype(cd)) + p["bv"]
    return val + adv - adv.mean()


if __name__ == "__main__":
    key = jax.random.PRNGKey(0)
    k_param, k_x1, k_x2 = jax.random.split(key, 3)
    params = init_params(k_param)

    # Config 1: tiny batch, f32 matmuls, single tile -> tight check vs f32 reference.
    x1 = jax.random.normal(k_x1, (2, N_STATES), dtype=jnp.float32)
    out1 = jax.block_until_ready(dqn_forward(x1, params, compute_dtype=jnp.float32))
    ref1 = _reference(x1, params, compute_dtype=jnp.float32)
    assert out1.shape == (2, N_ACTIONS)
    assert jnp.allclose(out1, ref1, atol=1e-2, rtol=1e-2), (out1, ref1)

    # Config 2: batch needing padding + multiple tiles (grid=3), bf16 matmuls,
    # exercises the in-kernel masked adv partial sum across tiles.
    x2 = jax.random.normal(k_x2, (300, N_STATES), dtype=jnp.float32)
    out2 = jax.block_until_ready(
        dqn_forward(x2, params, tile_b=128, compute_dtype=jnp.bfloat16))
    assert out2.shape == (300, N_ACTIONS)
    # Tight check against a reference doing the same bf16-input / f32-accum math.
    ref2_matched = _reference(x2, params, compute_dtype=jnp.bfloat16)
    assert jnp.allclose(out2, ref2_matched, atol=1e-2, rtol=1e-2), (out2, ref2_matched)
    # Loose sanity check against the pure-f32 reference (bf16 rounding only).
    ref2_f32 = _reference(x2, params, compute_dtype=jnp.float32)
    assert jnp.allclose(out2, ref2_f32, atol=1.0, rtol=1e-1), (out2, ref2_f32)

    # Config 3: default tiling path (auto >=2 tiles for megacore), bf16.
    out3 = jax.block_until_ready(dqn_forward(x2, params))
    assert out3.shape == (300, N_ACTIONS)
    assert jnp.allclose(out3, ref2_matched, atol=1e-2, rtol=1e-2), (out3, ref2_matched)

    print("KERNEL_OK")
</pallas_src>

<mosaic_0001>
module attributes {stable_mosaic.version = 11 : i64} {
  func.func @_dqn_kernel(%arg0: i32, %arg1: memref<8x128xf32, #tpu.memory_space<vmem>>, %arg2: memref<64x8xf32, #tpu.memory_space<vmem>>, %arg3: memref<64x1xf32, #tpu.memory_space<vmem>>, %arg4: memref<64x64xf32, #tpu.memory_space<vmem>>, %arg5: memref<64x1xf32, #tpu.memory_space<vmem>>, %arg6: memref<4x64xf32, #tpu.memory_space<vmem>>, %arg7: memref<4x1xf32, #tpu.memory_space<vmem>>, %arg8: memref<3x128xf32, #tpu.memory_space<vmem>>, %arg9: memref<8x128xf32, #tpu.memory_space<vmem>>) attributes {dimension_semantics = [#tpu.dimension_semantics<parallel>], iteration_bounds = array<i64: 1>, scalar_prefetch = 0 : i64, scratch_operands = 0 : i64, tpu.core_type = #tpu.core_type<tc>, window_params = [{transform_indices = @transform_0, window_bounds = array<i64: 8, 128>}, {pipeline_mode = #tpu.pipeline_mode<synchronous>, transform_indices = @transform_1, window_bounds = array<i64: 64, 8>}, {pipeline_mode = #tpu.pipeline_mode<synchronous>, transform_indices = @transform_2, window_bounds = array<i64: 64, 1>}, {pipeline_mode = #tpu.pipeline_mode<synchronous>, transform_indices = @transform_3, window_bounds = array<i64: 64, 64>}, {pipeline_mode = #tpu.pipeline_mode<synchronous>, transform_indices = @transform_4, window_bounds = array<i64: 64, 1>}, {pipeline_mode = #tpu.pipeline_mode<synchronous>, transform_indices = @transform_5, window_bounds = array<i64: 4, 64>}, {pipeline_mode = #tpu.pipeline_mode<synchronous>, transform_indices = @transform_6, window_bounds = array<i64: 4, 1>}, {transform_indices = @transform_7, window_bounds = array<i64: 3, 128>}, {transform_indices = @transform_8, window_bounds = array<i64: 8, 128>}]} {
    %c0 = arith.constant 0 : index
    %c0_0 = arith.constant 0 : index
    %0 = vector.load %arg1[%c0, %c0_0] : memref<8x128xf32, #tpu.memory_space<vmem>>, vector<8x128xf32>
    %c0_1 = arith.constant 0 : index
    %c0_2 = arith.constant 0 : index
    %1 = vector.load %arg2[%c0_1, %c0_2] : memref<64x8xf32, #tpu.memory_space<vmem>>, vector<64x8xf32>
    %cst = arith.constant dense<0.000000e+00> : vector<64x128xf32>
    %2 = tpu.matmul %1, %0, %cst {dimension_numbers = #tpu.dot_dimension_numbers<[1], [0], [0], [1], [0, 0, 1, 1], [], []>} : vector<64x8xf32>, vector<8x128xf32>, vector<64x128xf32> -> vector<64x128xf32>
    %c0_3 = arith.constant 0 : index
    %c0_4 = arith.constant 0 : index
    %3 = vector.load %arg3[%c0_3, %c0_4] : memref<64x1xf32, #tpu.memory_space<vmem>>, vector<64x1xf32>
    %4 = vector.broadcast %3 : vector<64x1xf32> to vector<64x128xf32>
    %5 = arith.addf %2, %4 : vector<64x128xf32>
    %cst_5 = arith.constant 0.000000e+00 : f32
    %6 = vector.broadcast %cst_5 : f32 to vector<64x128xf32>
    %7 = arith.maximumf %5, %6 : vector<64x128xf32>
    %c0_6 = arith.constant 0 : index
    %c0_7 = arith.constant 0 : index
    %8 = vector.load %arg4[%c0_6, %c0_7] : memref<64x64xf32, #tpu.memory_space<vmem>>, vector<64x64xf32>
    %cst_8 = arith.constant dense<0.000000e+00> : vector<64x128xf32>
    %9 = tpu.matmul %8, %7, %cst_8 {dimension_numbers = #tpu.dot_dimension_numbers<[1], [0], [0], [1], [0, 0, 1, 1], [], []>} : vector<64x64xf32>, vector<64x128xf32>, vector<64x128xf32> -> vector<64x128xf32>
    %c0_9 = arith.constant 0 : index
    %c0_10 = arith.constant 0 : index
    %10 = vector.load %arg5[%c0_9, %c0_10] : memref<64x1xf32, #tpu.memory_space<vmem>>, vector<64x1xf32>
    %11 = vector.broadcast %10 : vector<64x1xf32> to vector<64x128xf32>
    %12 = arith.addf %9, %11 : vector<64x128xf32>
    %cst_11 = arith.constant 0.000000e+00 : f32
    %13 = vector.broadcast %cst_11 : f32 to vector<64x128xf32>
    %14 = arith.maximumf %12, %13 : vector<64x128xf32>
    %c0_12 = arith.constant 0 : index
    %c0_13 = arith.constant 0 : index
    %15 = vector.load %arg6[%c0_12, %c0_13] : memref<4x64xf32, #tpu.memory_space<vmem>>, vector<4x64xf32>
    %cst_14 = arith.constant dense<0.000000e+00> : vector<4x128xf32>
    %16 = tpu.matmul %15, %14, %cst_14 {dimension_numbers = #tpu.dot_dimension_numbers<[1], [0], [0], [1], [0, 0, 1, 1], [], []>} : vector<4x64xf32>, vector<64x128xf32>, vector<4x128xf32> -> vector<4x128xf32>
    %c0_15 = arith.constant 0 : index
    %c0_16 = arith.constant 0 : index
    %17 = vector.load %arg7[%c0_15, %c0_16] : memref<4x1xf32, #tpu.memory_space<vmem>>, vector<4x1xf32>
    %18 = vector.broadcast %17 : vector<4x1xf32> to vector<4x128xf32>
    %19 = arith.addf %16, %18 : vector<4x128xf32>
    %20 = vector.extract_strided_slice %19 {offsets = [0, 0], sizes = [3, 128], strides = [1, 1]} : vector<4x128xf32> to vector<3x128xf32>
    %21 = vector.extract_strided_slice %19 {offsets = [3, 0], sizes = [1, 128], strides = [1, 1]} : vector<4x128xf32> to vector<1x128xf32>
    %22 = vector.broadcast %21 : vector<1x128xf32> to vector<3x128xf32>
    %23 = arith.addf %20, %22 : vector<3x128xf32>
    %c0_17 = arith.constant 0 : index
    %c0_18 = arith.constant 0 : index
    %24 = vector.load %arg8[%c0_17, %c0_18] : memref<3x128xf32, #tpu.memory_space<vmem>>, vector<3x128xf32>
    tpu.vector_store %arg8[%c0_17, %c0_18], %23 {strides = array<i32>} : memref<3x128xf32, #tpu.memory_space<vmem>>, vector<3x128xf32>,
    %25 = tpu.iota {dimensions = array<i32: 1>} : vector<3x128xi32>
    %c128_i32 = arith.constant 128 : i32
    %26 = arith.muli %arg0, %c128_i32 : i32
    %27 = vector.broadcast %26 : i32 to vector<3x128xi32>
    %28 = arith.addi %27, %25 : vector<3x128xi32>
    %c2_i32 = arith.constant 2 : i32
    %29 = vector.broadcast %c2_i32 : i32 to vector<3x128xi32>
    %30 = arith.cmpi slt, %28, %29 : vector<3x128xi32>
    %cst_19 = arith.constant 0.000000e+00 : f32
    %31 = vector.broadcast %cst_19 : f32 to vector<3x128xf32>
    %32 = arith.select %30, %20, %31 : vector<3x128xi1>, vector<3x128xf32>
    %33 = vector.shape_cast %32 : vector<3x128xf32> to vector<1x3x128xf32>
    %cst_20 = arith.constant dense<0.000000e+00> : vector<1xf32>
    %34 = vector.multi_reduction <add>, %33, %cst_20 [1, 2] : vector<1x3x128xf32> to vector<1xf32>
    %35 = vector.shape_cast %34 : vector<1xf32> to vector<1x1x1xf32>
    %36 = vector.extract %35[0, 0, 0] : f32 from vector<1x1x1xf32>
    %cst_21 = arith.constant 0.000000e+00 : f32
    %37 = vector.broadcast %cst_21 : f32 to vector<8x128xf32>
    %38 = vector.broadcast %36 : f32 to vector<8x128xf32>
    %39 = arith.addf %37, %38 : vector<8x128xf32>
    %c0_22 = arith.constant 0 : index
    %c0_23 = arith.constant 0 : index
    %40 = vector.load %arg9[%c0_22, %c0_23] : memref<8x128xf32, #tpu.memory_space<vmem>>, vector<8x128xf32>
    tpu.vector_store %arg9[%c0_22, %c0_23], %39 {strides = array<i32>} : memref<8x128xf32, #tpu.memory_space<vmem>>, vector<8x128xf32>,
    return
  }
  func.func @transform_0(%arg0: i32) -> (i32, i32) {
    %c0_i32 = arith.constant 0 : i32
    %c0_i32_0 = arith.constant 0 : i32
    return %c0_i32, %arg0 : i32, i32
  }
  func.func @transform_1(%arg0: i32) -> (i32, i32) {
    %c0_i32 = arith.constant 0 : i32
    %c0_i32_0 = arith.constant 0 : i32
    %c0_i32_1 = arith.constant 0 : i32
    return %c0_i32, %c0_i32_0 : i32, i32
  }
  func.func @transform_2(%arg0: i32) -> (i32, i32) {
    %c0_i32 = arith.constant 0 : i32
    %c0_i32_0 = arith.constant 0 : i32
    %c0_i32_1 = arith.constant 0 : i32
    return %c0_i32, %c0_i32_0 : i32, i32
  }
  func.func @transform_3(%arg0: i32) -> (i32, i32) {
    %c0_i32 = arith.constant 0 : i32
    %c0_i32_0 = arith.constant 0 : i32
    %c0_i32_1 = arith.constant 0 : i32
    return %c0_i32, %c0_i32_0 : i32, i32
  }
  func.func @transform_4(%arg0: i32) -> (i32, i32) {
    %c0_i32 = arith.constant 0 : i32
    %c0_i32_0 = arith.constant 0 : i32
    %c0_i32_1 = arith.constant 0 : i32
    return %c0_i32, %c0_i32_0 : i32, i32
  }
  func.func @transform_5(%arg0: i32) -> (i32, i32) {
    %c0_i32 = arith.constant 0 : i32
    %c0_i32_0 = arith.constant 0 : i32
    %c0_i32_1 = arith.constant 0 : i32
    return %c0_i32, %c0_i32_0 : i32, i32
  }
  func.func @transform_6(%arg0: i32) -> (i32, i32) {
    %c0_i32 = arith.constant 0 : i32
    %c0_i32_0 = arith.constant 0 : i32
    %c0_i32_1 = arith.constant 0 : i32
    return %c0_i32, %c0_i32_0 : i32, i32
  }
  func.func @transform_7(%arg0: i32) -> (i32, i32) {
    %c0_i32 = arith.constant 0 : i32
    %c0_i32_0 = arith.constant 0 : i32
    return %c0_i32, %arg0 : i32, i32
  }
  func.func @transform_8(%arg0: i32) -> (i32, i32) {
    %c0_i32 = arith.constant 0 : i32
    %c0_i32_0 = arith.constant 0 : i32
    return %arg0, %c0_i32 : i32, i32
  }
}

</mosaic_0001>

<llo_original>
// kernel: tpu_custom_call.1
$region0: #{tpu_custom_call.1}
  #allocation0 [shape = 'u32[]', space=smem, size = 0x4, offset = 0x4, fixed_abs, tag = 'smem constant byte address 0x4 - core index']
  #allocation1 [shape = 'u32[144,128]{1,0:T(1,128)}', space=vmem, size = 0x12000, scoped, tag = 'internal scratch']
  %s0 = inlined_call_operand.vmem [shape: f32[8,128], index: 0, kind: input, shape index: {}]
  %s1 = inlined_call_operand.vmem [shape: f32[64,8], index: 1, kind: input, shape index: {}]
  %s2 = inlined_call_operand.vmem [shape: f32[64,1], index: 2, kind: input, shape index: {}]
  %s3 = inlined_call_operand.vmem [shape: f32[64,64], index: 3, kind: input, shape index: {}]
  %s4 = inlined_call_operand.vmem [shape: f32[64,1], index: 4, kind: input, shape index: {}]
  %s5 = inlined_call_operand.vmem [shape: f32[4,64], index: 5, kind: input, shape index: {}]
  %s6 = inlined_call_operand.vmem [shape: f32[4,1], index: 6, kind: input, shape index: {}]
  %s7 = inlined_call_operand.hbm [shape: f32[3,128], index: 7, kind: output, shape index: {0}]
  %s8 = inlined_call_operand.hbm [shape: f32[8,128], index: 8, kind: output, shape index: {1}]
  %9 = xla_tuple %s7, %s8
  %s10 = sld [smem:[#allocation0]]
  $region46: #{tpu_custom_call.1} parent=0
    _
  %s12 = ssub.s32 1, %s10
  %s13 = scalar_select 0, %s12, %s10
  $region1: #{tpu_custom_call.1} parent=0
    #allocation2 [shape = 'u8[2048]{0}', space=vmem, size = 0x800, scoped, tag = 'output window, operand 0, single buffered']
    #allocation3 [shape = 's32[1]{0}', space=sflag, size = 0x4, scoped, tag = 'scoped memory for tpu_custom_call.1']
    #allocation4 [shape = 'u8[4096]{0}', space=vmem, size = 0x1000, scoped, tag = 'output window, operand 1, single buffered']
    #allocation5 [shape = 's32[1]{0}', space=sflag, size = 0x4, scoped, tag = 'scoped memory for tpu_custom_call.1']
    %14 = vsyncpa [#allocation3], 0
    %15 = vsyncpa [#allocation5], 0
    // Predicated region
    $region2: #{tpu_custom_call.1} parent=1 // pred_check
      _
    $region3: #{tpu_custom_call.1} parent=1 // pred_check_branch
      %17 = sbr.rel (0) target = $region5
    $region4: #{tpu_custom_call.1} parent=1 // pred_region
      _
    $region5: #{tpu_custom_call.1} parent=1 // pred_fallthru
      _
    // Predicated region
    $region6: #{tpu_custom_call.1} parent=1 // pred_check
      _
    $region7: #{tpu_custom_call.1} parent=1 // pred_check_branch
      %19 = sbr.rel (0) target = $region9
    $region8: #{tpu_custom_call.1} parent=1 // pred_region
      _
    $region9: #{tpu_custom_call.1} parent=1 // pred_fallthru
      _
    // Predicated region
    $region10: #{tpu_custom_call.1} parent=1 // pred_check
      _
    $region11: #{tpu_custom_call.1} parent=1 // pred_check_branch
      %21 = sbr.rel (0) target = $region13
    $region12: #{tpu_custom_call.1} parent=1 // pred_region
      _
    $region13: #{tpu_custom_call.1} parent=1 // pred_fallthru
      _
    // Predicated region
    $region14: #{tpu_custom_call.1} parent=1 // pred_check
      _
    $region15: #{tpu_custom_call.1} parent=1 // pred_check_branch
      %23 = sbr.rel (0) target = $region17
    $region16: #{tpu_custom_call.1} parent=1 // pred_region
      _
    $region17: #{tpu_custom_call.1} parent=1 // pred_fallthru
      _
    // Predicated region
    $region18: #{tpu_custom_call.1} parent=1 // pred_check
      _
    $region19: #{tpu_custom_call.1} parent=1 // pred_check_branch
      %25 = sbr.rel (0) target = $region21
    $region20: #{tpu_custom_call.1} parent=1 // pred_region
      _
    $region21: #{tpu_custom_call.1} parent=1 // pred_fallthru
      _
    // Predicated region
    $region22: #{tpu_custom_call.1} parent=1 // pred_check
      _
    $region23: #{tpu_custom_call.1} parent=1 // pred_check_branch
      %27 = sbr.rel (0) target = $region25
    $region24: #{tpu_custom_call.1} parent=1 // pred_region
      _
    $region25: #{tpu_custom_call.1} parent=1 // pred_fallthru
      _
    // Predicated region
    $region26: #{tpu_custom_call.1} parent=1 // pred_check
      _
    $region27: #{tpu_custom_call.1} parent=1 // pred_check_branch
      %29 = sbr.rel (0) target = $region29
    $region28: #{tpu_custom_call.1} parent=1 // pred_region
      _
    $region29: #{tpu_custom_call.1} parent=1 // pred_fallthru
      _
    %v30 = vld [vmem:[%s0] sm:$0xff]
    %v31 = vld [vmem:[%s1] sm:$0xff]
    %v32 = vld [vmem:[%s1 + $0x8] sm:$0xff]
    %v33 = vld [vmem:[%s1 + $0x10] sm:$0xff]
    %v34 = vld [vmem:[%s1 + $0x18] sm:$0xff]
    %v35 = vld [vmem:[%s1 + $0x20] sm:$0xff]
    %v36 = vld [vmem:[%s1 + $0x28] sm:$0xff]
    %v37 = vld [vmem:[%s1 + $0x30] sm:$0xff]
    %v38 = vld [vmem:[%s1 + $0x38] sm:$0xff]
    %v39 = vld [vmem:[%s2] sm:$0xff]
    %v40 = vld [vmem:[%s2 + $0x8] sm:$0xff]
    %v41 = vld [vmem:[%s2 + $0x10] sm:$0xff]
    %v42 = vld [vmem:[%s2 + $0x18] sm:$0xff]
    %v43 = vld [vmem:[%s2 + $0x20] sm:$0xff]
    %v44 = vld [vmem:[%s2 + $0x28] sm:$0xff]
    %v45 = vld [vmem:[%s2 + $0x30] sm:$0xff]
    %v46 = vld [vmem:[%s2 + $0x38] sm:$0xff]
    %48 = vset.pattern.permute.xlu0 0
    %49 = vperm.xlu0 %48, %v39
    %v50 = vpop.permute.xlu0 %49
    %53 = vset.pattern.permute.xlu0 0
    %54 = vperm.xlu0 %53, %v40
    %v55 = vpop.permute.xlu0 %54
    %58 = vset.pattern.permute.xlu0 0
    %59 = vperm.xlu0 %58, %v41
    %v60 = vpop.permute.xlu0 %59
    %63 = vset.pattern.permute.xlu0 0
    %64 = vperm.xlu0 %63, %v42
    %v65 = vpop.permute.xlu0 %64
    %68 = vset.pattern.permute.xlu0 0
    %69 = vperm.xlu0 %68, %v43
    %v70 = vpop.permute.xlu0 %69
    %73 = vset.pattern.permute.xlu0 0
    %74 = vperm.xlu0 %73, %v44
    %v75 = vpop.permute.xlu0 %74
    %78 = vset.pattern.permute.xlu0 0
    %79 = vperm.xlu0 %78, %v45
    %v80 = vpop.permute.xlu0 %79
    %83 = vset.pattern.permute.xlu0 0
    %84 = vperm.xlu0 %83, %v46
    %v85 = vpop.permute.xlu0 %84
    %vm87 = vcmask 64512
    %v89 = vsel %vm87, %v31, 0
    %v92 = vsel %vm87, %v32, 0
    %v95 = vsel %vm87, %v33, 0
    %v98 = vsel %vm87, %v34, 0
    %v101 = vsel %vm87, %v35, 0
    %v104 = vsel %vm87, %v36, 0
    %v107 = vsel %vm87, %v37, 0
    %v110 = vsel %vm87, %v38, 0
    %112 = vmatprep.subr.mxu0 0.0
    %113 = vmatpush1.msra.mxu0 %v30
    %114 = vmatprep.subr.mxu0 0.0
    %115 = vmatpush1.msra.mxu0 0.0
    %116 = vmatprep.subr.mxu0 0.0
    %117 = vmatpush1.msra.mxu0 0.0
    %118 = vmatprep.subr.mxu0 0.0
    %119 = vmatpush1.msra.mxu0 0.0
    %120 = vmatprep.subr.mxu0 0.0
    %121 = vmatpush1.msra.mxu0 0.0
    %122 = vmatprep.subr.mxu0 0.0
    %123 = vmatpush1.msra.mxu0 0.0
    %124 = vmatprep.subr.mxu0 0.0
    %125 = vmatpush1.msra.mxu0 0.0
    %126 = vmatprep.subr.mxu0 0.0
    %127 = vmatpush1.msra.mxu0 0.0
    %128 = vmatprep.subr.mxu0 0.0
    %129 = vmatpush1.msra.mxu0 0.0
    %130 = vmatprep.subr.mxu0 0.0
    %131 = vmatpush1.msra.mxu0 0.0
    %132 = vmatprep.subr.mxu0 0.0
    %133 = vmatpush1.msra.mxu0 0.0
    %134 = vmatprep.subr.mxu0 0.0
    %135 = vmatpush1.msra.mxu0 0.0
    %136 = vmatprep.subr.mxu0 0.0
    %137 = vmatpush1.msra.mxu0 0.0
    %138 = vmatprep.subr.mxu0 0.0
    %139 = vmatpush1.msra.mxu0 0.0
    %140 = vmatprep.subr.mxu0 0.0
    %141 = vmatpush1.msra.mxu0 0.0
    %142 = vmatprep.subr.mxu0 0.0
    %143 = vmatpush1.msra.mxu0 0.0
    %144 = vmatprep.subr.mxu0 0.0
    %145 = vmatpush1.msra.mxu0 0.0
    %146 = vmatprep.subr.mxu0 0.0
    %147 = vmatpush1.msra.mxu0 0.0
    %148 = vmatprep.subr.mxu0 0.0
    %149 = vmatpush1.msra.mxu0 0.0
    %150 = vmatprep.subr.mxu0 0.0
    %151 = vmatpush1.msra.mxu0 0.0
    %152 = vmatprep.subr.mxu0 0.0
    %153 = vmatpush1.msra.mxu0 0.0
    %154 = vmatprep.subr.mxu0 0.0
    %155 = vmatpush1.msra.mxu0 0.0
    %156 = vmatprep.subr.mxu0 0.0
    %157 = vmatpush1.msra.mxu0 0.0
    %158 = vmatprep.subr.mxu0 0.0
    %159 = vmatpush1.msra.mxu0 0.0
    %160 = vmatprep.subr.mxu0 0.0
    %161 = vmatpush1.msra.mxu0 0.0
    %162 = vmatprep.subr.mxu0 0.0
    %163 = vmatpush1.msra.mxu0 0.0
    %164 = vmatprep.subr.mxu0 0.0
    %165 = vmatpush1.msra.mxu0 0.0
    %166 = vmatprep.subr.mxu0 0.0
    %167 = vmatpush1.msra.mxu0 0.0
    %168 = vmatprep.subr.mxu0 0.0
    %169 = vmatpush1.msra.mxu0 0.0
    %170 = vmatprep.subr.mxu0 0.0
    %171 = vmatpush1.msra.mxu0 0.0
    %172 = vmatprep.subr.mxu0 0.0
    %173 = vmatpush1.msra.mxu0 0.0
    %174 = vmatprep.subr.mxu0 0.0
    %175 = vmatpush1.msra.mxu0 0.0
    %176 = vmatprep.mubr.f32.mxu0 0.0
    %177 = vmatmul.mubr.f32.gmra.mrb[0].mxu0 %v89
    %v178 = vpop.f32.mrb[0].mxu0
    %v179 = vadd.f32 %v50, %v178
    %v180 = vpop.f32.mrb[0].mxu0
    %181 = vmatprep.mubr.f32.mxu0 0.0
    %182 = vmatmul.mubr.f32.gmra.mrb[0].mxu0 %v92
    %v183 = vpop.f32.mrb[0].mxu0
    %v184 = vadd.f32 %v55, %v183
    %v185 = vpop.f32.mrb[0].mxu0
    %186 = vmatprep.mubr.f32.mxu0 0.0
    %187 = vmatmul.mubr.f32.gmra.mrb[0].mxu0 %v95
    %v188 = vpop.f32.mrb[0].mxu0
    %v189 = vadd.f32 %v60, %v188
    %v190 = vpop.f32.mrb[0].mxu0
    %191 = vmatprep.mubr.f32.mxu0 0.0
    %192 = vmatmul.mubr.f32.gmra.mrb[0].mxu0 %v98
    %v193 = vpop.f32.mrb[0].mxu0
    %v194 = vadd.f32 %v65, %v193
    %v195 = vpop.f32.mrb[0].mxu0
    %196 = vmatprep.mubr.f32.mxu0 0.0
    %197 = vmatmul.mubr.f32.gmra.mrb[0].mxu0 %v101
    %v198 = vpop.f32.mrb[0].mxu0
    %v199 = vadd.f32 %v70, %v198
    %v200 = vpop.f32.mrb[0].mxu0
    %201 = vmatprep.mubr.f32.mxu0 0.0
    %202 = vmatmul.mubr.f32.gmra.mrb[0].mxu0 %v104
    %v203 = vpop.f32.mrb[0].mxu0
    %v204 = vadd.f32 %v75, %v203
    %v205 = vpop.f32.mrb[0].mxu0
    %206 = vmatprep.mubr.f32.mxu0 0.0
    %207 = vmatmul.mubr.f32.gmra.mrb[0].mxu0 %v107
    %v208 = vpop.f32.mrb[0].mxu0
    %v209 = vadd.f32 %v80, %v208
    %v210 = vpop.f32.mrb[0].mxu0
    %211 = vmatprep.mubr.f32.mxu0 0.0
    %212 = vmatmul.mubr.f32.gmra.mrb[0].mxu0 %v110
    %v213 = vpop.f32.mrb[0].mxu0
    %v214 = vadd.f32 %v85, %v213
    %v215 = vpop.f32.mrb[0].mxu0
    %216 = vdwg.mxu0
    %v217 = vmax.f32 %v179, 0.0
    %v218 = vmax.f32 %v184, 0.0
    %v219 = vmax.f32 %v189, 0.0
    %v220 = vmax.f32 %v194, 0.0
    %v221 = vmax.f32 %v199, 0.0
    %v222 = vmax.f32 %v204, 0.0
    %v223 = vmax.f32 %v209, 0.0
    %v224 = vmax.f32 %v214, 0.0
    %v225 = vld [vmem:[%s3] sm:$0xff]
    %v226 = vld [vmem:[%s3 + $0x8] sm:$0xff]
    %v227 = vld [vmem:[%s3 + $0x10] sm:$0xff]
    %v228 = vld [vmem:[%s3 + $0x18] sm:$0xff]
    %v229 = vld [vmem:[%s3 + $0x20] sm:$0xff]
    %v230 = vld [vmem:[%s3 + $0x28] sm:$0xff]
    %v231 = vld [vmem:[%s3 + $0x30] sm:$0xff]
    %v232 = vld [vmem:[%s3 + $0x38] sm:$0xff]
    %v233 = vld [vmem:[%s4] sm:$0xff]
    %v234 = vld [vmem:[%s4 + $0x8] sm:$0xff]
    %v235 = vld [vmem:[%s4 + $0x10] sm:$0xff]
    %v236 = vld [vmem:[%s4 + $0x18] sm:$0xff]
    %v237 = vld [vmem:[%s4 + $0x20] sm:$0xff]
    %v238 = vld [vmem:[%s4 + $0x28] sm:$0xff]
    %v239 = vld [vmem:[%s4 + $0x30] sm:$0xff]
    %v240 = vld [vmem:[%s4 + $0x38] sm:$0xff]
    %242 = vset.pattern.permute.xlu0 0
    %243 = vperm.xlu0 %242, %v233
    %v244 = vpop.permute.xlu0 %243
    %247 = vset.pattern.permute.xlu0 0
    %248 = vperm.xlu0 %247, %v234
    %v249 = vpop.permute.xlu0 %248
    %252 = vset.pattern.permute.xlu0 0
    %253 = vperm.xlu0 %252, %v235
    %v254 = vpop.permute.xlu0 %253
    %257 = vset.pattern.permute.xlu0 0
    %258 = vperm.xlu0 %257, %v236
    %v259 = vpop.permute.xlu0 %258
    %262 = vset.pattern.permute.xlu0 0
    %263 = vperm.xlu0 %262, %v237
    %v264 = vpop.permute.xlu0 %263
    %267 = vset.pattern.permute.xlu0 0
    %268 = vperm.xlu0 %267, %v238
    %v269 = vpop.permute.xlu0 %268
    %272 = vset.pattern.permute.xlu0 0
    %273 = vperm.xlu0 %272, %v239
    %v274 = vpop.permute.xlu0 %273
    %277 = vset.pattern.permute.xlu0 0
    %278 = vperm.xlu0 %277, %v240
    %v279 = vpop.permute.xlu0 %278
    %vm281 = vcmask 523264
    %v283 = vsel %vm281, %v225, 0
    %v286 = vsel %vm281, %v226, 0
    %v289 = vsel %vm281, %v227, 0
    %v292 = vsel %vm281, %v228, 0
    %v295 = vsel %vm281, %v229, 0
    %v298 = vsel %vm281, %v230, 0
    %v301 = vsel %vm281, %v231, 0
    %v304 = vsel %vm281, %v232, 0
    %306 = vmatprep.subr.mxu0 0.0
    %307 = vmatpush1.msra.mxu0 %v217
    %308 = vmatprep.subr.mxu0 0.0
    %309 = vmatpush1.msra.mxu0 %v218
    %310 = vmatprep.subr.mxu0 0.0
    %311 = vmatpush1.msra.mxu0 %v219
    %312 = vmatprep.subr.mxu0 0.0
    %313 = vmatpush1.msra.mxu0 %v220
    %314 = vmatprep.subr.mxu0 0.0
    %315 = vmatpush1.msra.mxu0 %v221
    %316 = vmatprep.subr.mxu0 0.0
    %317 = vmatpush1.msra.mxu0 %v222
    %318 = vmatprep.subr.mxu0 0.0
    %319 = vmatpush1.msra.mxu0 %v223
    %320 = vmatprep.subr.mxu0 0.0
    %321 = vmatpush1.msra.mxu0 %v224
    %322 = vmatprep.subr.mxu0 0.0
    %323 = vmatpush1.msra.mxu0 0.0
    %324 = vmatprep.subr.mxu0 0.0
    %325 = vmatpush1.msra.mxu0 0.0
    %326 = vmatprep.subr.mxu0 0.0
    %327 = vmatpush1.msra.mxu0 0.0
    %328 = vmatprep.subr.mxu0 0.0
    %329 = vmatpush1.msra.mxu0 0.0
    %330 = vmatprep.subr.mxu0 0.0
    %331 = vmatpush1.msra.mxu0 0.0
    %332 = vmatprep.subr.mxu0 0.0
    %333 = vmatpush1.msra.mxu0 0.0
    %334 = vmatprep.subr.mxu0 0.0
    %335 = vmatpush1.msra.mxu0 0.0
    %336 = vmatprep.subr.mxu0 0.0
    %337 = vmatpush1.msra.mxu0 0.0
    %338 = vmatprep.subr.mxu0 0.0
    %339 = vmatpush1.msra.mxu0 0.0
    %340 = vmatprep.subr.mxu0 0.0
    %341 = vmatpush1.msra.mxu0 0.0
    %342 = vmatprep.subr.mxu0 0.0
    %343 = vmatpush1.msra.mxu0 0.0
    %344 = vmatprep.subr.mxu0 0.0
    %345 = vmatpush1.msra.mxu0 0.0
    %346 = vmatprep.subr.mxu0 0.0
    %347 = vmatpush1.msra.mxu0 0.0
    %348 = vmatprep.subr.mxu0 0.0
    %349 = vmatpush1.msra.mxu0 0.0
    %350 = vmatprep.subr.mxu0 0.0
    %351 = vmatpush1.msra.mxu0 0.0
    %352 = vmatprep.subr.mxu0 0.0
    %353 = vmatpush1.msra.mxu0 0.0
    %354 = vmatprep.subr.mxu0 0.0
    %355 = vmatpush1.msra.mxu0 0.0
    %356 = vmatprep.subr.mxu0 0.0
    %357 = vmatpush1.msra.mxu0 0.0
    %358 = vmatprep.subr.mxu0 0.0
    %359 = vmatpush1.msra.mxu0 0.0
    %360 = vmatprep.subr.mxu0 0.0
    %361 = vmatpush1.msra.mxu0 0.0
    %362 = vmatprep.subr.mxu0 0.0
    %363 = vmatpush1.msra.mxu0 0.0
    %364 = vmatprep.subr.mxu0 0.0
    %365 = vmatpush1.msra.mxu0 0.0
    %366 = vmatprep.subr.mxu0 0.0
    %367 = vmatpush1.msra.mxu0 0.0
    %368 = vmatprep.subr.mxu0 0.0
    %369 = vmatpush1.msra.mxu0 0.0
    %370 = vmatprep.mubr.f32.mxu0 0.0
    %371 = vmatmul.mubr.f32.gmra.mrb[0].mxu0 %v283
    %v372 = vpop.f32.mrb[0].mxu0
    %v373 = vadd.f32 %v244, %v372
    %v374 = vpop.f32.mrb[0].mxu0
    %375 = vmatprep.mubr.f32.mxu0 0.0
    %376 = vmatmul.mubr.f32.gmra.mrb[0].mxu0 %v286
    %v377 = vpop.f32.mrb[0].mxu0
    %v378 = vadd.f32 %v249, %v377
    %v379 = vpop.f32.mrb[0].mxu0
    %380 = vmatprep.mubr.f32.mxu0 0.0
    %381 = vmatmul.mubr.f32.gmra.mrb[0].mxu0 %v289
    %v382 = vpop.f32.mrb[0].mxu0
    %v383 = vadd.f32 %v254, %v382
    %v384 = vpop.f32.mrb[0].mxu0
    %385 = vmatprep.mubr.f32.mxu0 0.0
    %386 = vmatmul.mubr.f32.gmra.mrb[0].mxu0 %v292
    %v387 = vpop.f32.mrb[0].mxu0
    %v388 = vadd.f32 %v259, %v387
    %v389 = vpop.f32.mrb[0].mxu0
    %390 = vmatprep.mubr.f32.mxu0 0.0
    %391 = vmatmul.mubr.f32.gmra.mrb[0].mxu0 %v295
    %v392 = vpop.f32.mrb[0].mxu0
    %v393 = vadd.f32 %v264, %v392
    %v394 = vpop.f32.mrb[0].mxu0
    %395 = vmatprep.mubr.f32.mxu0 0.0
    %396 = vmatmul.mubr.f32.gmra.mrb[0].mxu0 %v298
    %v397 = vpop.f32.mrb[0].mxu0
    %v398 = vadd.f32 %v269, %v397
    %v399 = vpop.f32.mrb[0].mxu0
    %400 = vmatprep.mubr.f32.mxu0 0.0
    %401 = vmatmul.mubr.f32.gmra.mrb[0].mxu0 %v301
    %v402 = vpop.f32.mrb[0].mxu0
    %v403 = vadd.f32 %v274, %v402
    %v404 = vpop.f32.mrb[0].mxu0
    %405 = vmatprep.mubr.f32.mxu0 0.0
    %406 = vmatmul.mubr.f32.gmra.mrb[0].mxu0 %v304
    %v407 = vpop.f32.mrb[0].mxu0
    %v408 = vadd.f32 %v279, %v407
    %v409 = vpop.f32.mrb[0].mxu0
    %410 = vdwg.mxu0
    %v411 = vmax.f32 %v373, 0.0
    %v412 = vmax.f32 %v378, 0.0
    %v413 = vmax.f32 %v383, 0.0
    %v414 = vmax.f32 %v388, 0.0
    %v415 = vmax.f32 %v393, 0.0
    %v416 = vmax.f32 %v398, 0.0
    %v417 = vmax.f32 %v403, 0.0
    %v418 = vmax.f32 %v408, 0.0
    %v419 = vld [vmem:[%s5] sm:$0xf]
    %v420 = vld [vmem:[%s6] sm:$0xf]
    %422 = vset.pattern.permute.xlu0 0
    %423 = vperm.xlu0 %422, %v420
    %v424 = vpop.permute.xlu0 %423
    %v427 = vsel %vm281, %v419, 0
    %429 = vmatprep.subr.mxu0 0.0
    %430 = vmatpush1.msra.mxu0 %v411
    %431 = vmatprep.subr.mxu0 0.0
    %432 = vmatpush1.msra.mxu0 %v412
    %433 = vmatprep.subr.mxu0 0.0
    %434 = vmatpush1.msra.mxu0 %v413
    %435 = vmatprep.subr.mxu0 0.0
    %436 = vmatpush1.msra.mxu0 %v414
    %437 = vmatprep.subr.mxu0 0.0
    %438 = vmatpush1.msra.mxu0 %v415
    %439 = vmatprep.subr.mxu0 0.0
    %440 = vmatpush1.msra.mxu0 %v416
    %441 = vmatprep.subr.mxu0 0.0
    %442 = vmatpush1.msra.mxu0 %v417
    %443 = vmatprep.subr.mxu0 0.0
    %444 = vmatpush1.msra.mxu0 %v418
    %445 = vmatprep.subr.mxu0 0.0
    %446 = vmatpush1.msra.mxu0 0.0
    %447 = vmatprep.subr.mxu0 0.0
    %448 = vmatpush1.msra.mxu0 0.0
    %449 = vmatprep.subr.mxu0 0.0
    %450 = vmatpush1.msra.mxu0 0.0
    %451 = vmatprep.subr.mxu0 0.0
    %452 = vmatpush1.msra.mxu0 0.0
    %453 = vmatprep.subr.mxu0 0.0
    %454 = vmatpush1.msra.mxu0 0.0
    %455 = vmatprep.subr.mxu0 0.0
    %456 = vmatpush1.msra.mxu0 0.0
    %457 = vmatprep.subr.mxu0 0.0
    %458 = vmatpush1.msra.mxu0 0.0
    %459 = vmatprep.subr.mxu0 0.0
    %460 = vmatpush1.msra.mxu0 0.0
    %461 = vmatprep.subr.mxu0 0.0
    %462 = vmatpush1.msra.mxu0 0.0
    %463 = vmatprep.subr.mxu0 0.0
    %464 = vmatpush1.msra.mxu0 0.0
    %465 = vmatprep.subr.mxu0 0.0
    %466 = vmatpush1.msra.mxu0 0.0
    %467 = vmatprep.subr.mxu0 0.0
    %468 = vmatpush1.msra.mxu0 0.0
    %469 = vmatprep.subr.mxu0 0.0
    %470 = vmatpush1.msra.mxu0 0.0
    %471 = vmatprep.subr.mxu0 0.0
    %472 = vmatpush1.msra.mxu0 0.0
    %473 = vmatprep.subr.mxu0 0.0
    %474 = vmatpush1.msra.mxu0 0.0
    %475 = vmatprep.subr.mxu0 0.0
    %476 = vmatpush1.msra.mxu0 0.0
    %477 = vmatprep.subr.mxu0 0.0
    %478 = vmatpush1.msra.mxu0 0.0
    %479 = vmatprep.subr.mxu0 0.0
    %480 = vmatpush1.msra.mxu0 0.0
    %481 = vmatprep.subr.mxu0 0.0
    %482 = vmatpush1.msra.mxu0 0.0
    %483 = vmatprep.subr.mxu0 0.0
    %484 = vmatpush1.msra.mxu0 0.0
    %485 = vmatprep.subr.mxu0 0.0
    %486 = vmatpush1.msra.mxu0 0.0
    %487 = vmatprep.subr.mxu0 0.0
    %488 = vmatpush1.msra.mxu0 0.0
    %489 = vmatprep.subr.mxu0 0.0
    %490 = vmatpush1.msra.mxu0 0.0
    %491 = vmatprep.subr.mxu0 0.0
    %492 = vmatpush1.msra.mxu0 0.0
    %493 = vmatprep.mubr.f32.mxu0 0.0
    %494 = vmatmul.mubr.f32.gmra.mrb[0].mxu0 %v427
    %v495 = vpop.f32.mrb[0].mxu0
    %v496 = vadd.f32 %v424, %v495
    %v497 = vpop.f32.mrb[0].mxu0
    %498 = vdwg.mxu0
    %v499 = vlaneseq
    %v500 = vshrl.u32 %v499, 7
    %v501 = vsub.s32 3, %v500
    %v502 = vrot.slane %v496, %v501
    %v503 = vadd.f32 %v496, %v502
    %504 = vst [vmem:[#allocation2] sm:$0x7] %v503
    %v505 = vlaneseq
    %v506 = vand.u32 %v505, 127
    %s507 = smul.u32 0, 128
    %v508 = vstv %s507
    %v509 = vadd.s32 %v508, %v506
    %vm510 = vcmp.lt.s32.totalorder %v509, 2
    %v511 = vsel %vm510, %v496, 0.0
    %vm512 = vcmask 1042432
    %v513 = vsel %vm512, %v511, 0.0
    %514 = vadd.xlane.f32.xlu0 %v513
    %v515 = vpop.xlane.xlu0 %514
    %v516 = vrot.slane %v515, 4
    %v517 = vadd.f32 %v515, %v516
    %v518 = vrot.slane %v517, 2
    %v519 = vadd.f32 %v517, %v518
    %v520 = vrot.slane %v519, 1
    %v521 = vadd.f32 %v519, %v520
    %s522 = vtos %v521
    %v523 = vstv %s522
    %v524 = vadd.f32 %v523, 0.0
    %525 = vst [vmem:[#allocation4] sm:$0xff] %v524
    // Predicated region
    $region30: #{tpu_custom_call.1} parent=1 // pred_check
      _
    $region31: #{tpu_custom_call.1} parent=1 // pred_check_branch
      %527 = sbr.rel (0) target = $region33
    $region32: #{tpu_custom_call.1} parent=1 // pred_region
      %s529 = ssub.s32 64, 64
      %530 = vsyncadd [#allocation3], %s529
      %s532 = sshll.u32 [#allocation2], 4
      %s533 = int_to_ptr.vmem [resolvable:$true] %s532
      %535 = dma.vmem_to_hbm [thread:$0]  %s533, 64, %s7, [#allocation3]
    $region33: #{tpu_custom_call.1} parent=1 // pred_fallthru
      _
    // Predicated region
    $region34: #{tpu_custom_call.1} parent=1 // pred_check
      _
    $region35: #{tpu_custom_call.1} parent=1 // pred_check_branch
      %537 = sbr.rel (0) target = $region37
    $region36: #{tpu_custom_call.1} parent=1 // pred_region
      %s539 = ssub.s32 128, 128
      %540 = vsyncadd [#allocation5], %s539
      %s542 = sshll.u32 [#allocation4], 4
      %s543 = int_to_ptr.vmem [resolvable:$true] %s542
      %545 = dma.vmem_to_hbm [thread:$0]  %s543, 128, %s8, [#allocation5]
    $region37: #{tpu_custom_call.1} parent=1 // pred_fallthru
      _
    // Predicated region
    $region38: #{tpu_custom_call.1} parent=1 // pred_check
      _
    $region39: #{tpu_custom_call.1} parent=1 // pred_check_branch
      %547 = sbr.rel (0) target = $region41
    $region40: #{tpu_custom_call.1} parent=1 // pred_region
      %548 = dma.done [#allocation3], 64
    $region41: #{tpu_custom_call.1} parent=1 // pred_fallthru
      _
    // Predicated region
    $region42: #{tpu_custom_call.1} parent=1 // pred_check
      _
    $region43: #{tpu_custom_call.1} parent=1 // pred_check_branch
      %550 = sbr.rel (0) target = $region45
    $region44: #{tpu_custom_call.1} parent=1 // pred_region
      %551 = dma.done [#allocation5], 128
    $region45: #{tpu_custom_call.1} parent=1 // pred_fallthru
      _
    %552 = vsyncpa [#allocation3], 1
    %553 = vsyncpa [#allocation5], 1

</llo_original>
